<compile_context>
chip_gen: v6e
topology: v6e:2x2x1
jax: 0.10.0
libtpu: 0.0.40
codegen_flags: <defaults>
</compile_context>

<pallas_src>
import functools

import jax
import jax.numpy as jnp
from jax import lax
from jax.experimental import pallas as pl


def encoder_kernel(x_ref, w1t_ref, b1_ref, w2_ref, b2_ref, out_ref):
    # x: (B, Din) f32 ; w1t: (H, Din) bf16 (lane-dense) ; b1: (1, H) bf16|f32
    # w2: (H, Op) bf16 (fused + lane-padded mu|sigma heads) ; b2: (1, Op) f32
    x = x_ref[...].astype(w1t_ref.dtype)              # f32 -> bf16 cast in VMEM (VPU)
    # Contract the lane-dense 1024-wide axis of both operands: (B,Din) . (H,Din) -> (B,H).
    h = lax.dot_general(
        x, w1t_ref[...],
        dimension_numbers=(((1,), (1,)), ((), ())),
        preferred_element_type=jnp.float32)           # MXU, f32 accumulation
    # Bias + ReLU epilogue in b1's dtype: bf16 on v6e/v7x, f32 on v5e (no bf16 VPU there).
    h = jnp.maximum(h.astype(b1_ref.dtype) + b1_ref[...], 0.0)
    h = h.astype(w2_ref.dtype)                        # bf16 for the second MXU stage
    y = jnp.dot(h, w2_ref[...], preferred_element_type=jnp.float32) + b2_ref[...]
    out_ref[...] = y.astype(out_ref.dtype)            # lane-dense (B, 128) store


def _round_up(a, m):
    return ((a + m - 1) // m) * m


def _default_bf16_epilogue():
    # bf16 VALU exists on v6e / v7x; keep the f32 epilogue on v5e (and unknown chips).
    try:
        kind = jax.devices()[0].device_kind.lower()
    except Exception:
        return False
    return ("v6" in kind) or ("v7" in kind)


def prepare_params(params, bf16_epilogue=None):
    """One-time weight preparation (run ONCE, off the per-call hot path):
      * fuse mu/sigma heads into one (H, 2L) weight / (1, 2L) bias,
      * pad the fused output axis to a multiple of 128 lanes (zero columns),
      * transpose w1 to (hidden, d_in) so its lane axis is the wide 1024 input axis,
      * cast weights to bf16; biases to the epilogue dtype (bf16 on v6e/v7x, f32 on v5e).
    """
    if bf16_epilogue is None:
        bf16_epilogue = _default_bf16_epilogue()

    w1, b1 = params["w1"], params["b1"]
    wmu, bmu = params["wmu"], params["bmu"]
    wsg, bsg = params["wsigma"], params["bsigma"]
    latent = wmu.shape[1]

    w2 = jnp.concatenate([wmu, wsg], axis=1)                 # (H, 2L)
    b2 = jnp.concatenate([bmu, bsg], axis=1)                 # (1, 2L)
    out_pad = _round_up(2 * latent, 128)                     # lane-dense fused output
    w2 = jnp.pad(w2, ((0, 0), (0, out_pad - 2 * latent)))
    b2 = jnp.pad(b2, ((0, 0), (0, out_pad - 2 * latent)))

    ep_dtype = jnp.bfloat16 if bf16_epilogue else jnp.float32
    return {
        "w1t": jnp.asarray(w1.T, jnp.bfloat16),              # (H, Din) lane-dense
        "b1": jnp.asarray(b1, ep_dtype),                     # (1, H)
        "w2": jnp.asarray(w2, jnp.bfloat16),                 # (H, out_pad)
        "b2": jnp.asarray(b2, jnp.float32),                  # (1, out_pad)
    }


@functools.partial(jax.jit, static_argnames=("latent_size",))
def encoder_forward(x_nchw, prepared, latent_size):
    """Returns (mu, sigma) with shapes (batch, latent_size), matching the PyTorch module."""
    n = x_nchw.shape[0]
    x2d = x_nchw.reshape(n, -1)                               # == torch x.view(x.size(0), -1)

    w1t, b1 = prepared["w1t"], prepared["b1"]
    w2, b2 = prepared["w2"], prepared["b2"]
    hidden, d_in = w1t.shape
    out_pad = w2.shape[1]

    # Single grid point; every block equals the full array (so the (8,128) divisibility
    # rule does not apply and no batch padding is needed).
    full = lambda shape: pl.BlockSpec(shape, lambda: (0,) * len(shape))

    flops = 2 * n * (d_in * hidden + hidden * out_pad)
    bytes_accessed = (
        x2d.size * 4 + w1t.size * 2 + b1.size * b1.dtype.itemsize
        + w2.size * 2 + b2.size * 4 + n * out_pad * 4)

    out = pl.pallas_call(
        encoder_kernel,
        out_shape=jax.ShapeDtypeStruct((n, out_pad), jnp.float32),
        in_specs=[
            full((n, d_in)),
            full((hidden, d_in)), full((1, hidden)),
            full((hidden, out_pad)), full((1, out_pad)),
        ],
        out_specs=full((n, out_pad)),
        cost_estimate=pl.CostEstimate(
            flops=flops, transcendentals=0, bytes_accessed=bytes_accessed),
    )(x2d, w1t, b1, w2, b2)

    mu = out[:, :latent_size]
    sigma = out[:, latent_size:2 * latent_size]
    return mu, sigma


def init_params(key, input_size, hidden_size, latent_size):
    """Deterministic init mimicking torch.nn.Linear default (uniform ±1/sqrt(fan_in)).
    Weights stored as (fan_in, fan_out)."""
    ks = jax.random.split(key, 6)

    def lin(kw, kb, fan_in, fan_out):
        bound = 1.0 / jnp.sqrt(fan_in)
        w = jax.random.uniform(kw, (fan_in, fan_out), jnp.float32, -bound, bound)
        b = jax.random.uniform(kb, (1, fan_out), jnp.float32, -bound, bound)
        return w, b

    w1, b1 = lin(ks[0], ks[1], input_size, hidden_size)
    wmu, bmu = lin(ks[2], ks[3], hidden_size, latent_size)
    wsg, bsg = lin(ks[4], ks[5], hidden_size, latent_size)
    return {"w1": w1, "b1": b1, "wmu": wmu, "bmu": bmu, "wsigma": wsg, "bsigma": bsg}


if __name__ == "__main__":
    key = jax.random.PRNGKey(0)
    k_x, k_p = jax.random.split(key)

    # Small shapes consistent with the module: NCHW image flattened to input_size.
    batch, C, H, W = 2, 4, 16, 16
    input_size = C * H * W          # 1024
    hidden_size = 32
    latent_size = 16

    x = jax.random.normal(k_x, (batch, C, H, W), jnp.float32)
    params = init_params(k_p, input_size, hidden_size, latent_size)

    prepared = prepare_params(params)   # one-time, off the per-call hot path
    mu, sigma = encoder_forward(x, prepared, latent_size=latent_size)
    jax.block_until_ready((mu, sigma))

    # Pure-JAX reference with the SAME bf16-quantized operands, f32 accumulation, and
    # the SAME epilogue dtype, so the comparison isolates the kernel from dtype choices.
    ep_dtype = prepared["b1"].dtype
    x2d_b = x.reshape(batch, -1).astype(jnp.bfloat16)
    w1_b = params["w1"].astype(jnp.bfloat16)
    h_ref = jnp.dot(x2d_b, w1_b, preferred_element_type=jnp.float32)
    h_ref = jnp.maximum(h_ref.astype(ep_dtype) + params["b1"].astype(ep_dtype), 0.0)
    h_ref = h_ref.astype(jnp.bfloat16)
    mu_ref = jnp.dot(h_ref, params["wmu"].astype(jnp.bfloat16),
                     preferred_element_type=jnp.float32) + params["bmu"]
    sg_ref = jnp.dot(h_ref, params["wsigma"].astype(jnp.bfloat16),
                     preferred_element_type=jnp.float32) + params["bsigma"]

    assert mu.shape == (batch, latent_size) and sigma.shape == (batch, latent_size)
    assert jnp.allclose(mu, mu_ref, atol=2e-3, rtol=2e-3)
    assert jnp.allclose(sigma, sg_ref, atol=2e-3, rtol=2e-3)

    print("KERNEL_OK")
</pallas_src>

<mosaic_0001>
module attributes {stable_mosaic.version = 11 : i64} {
  func.func @encoder_kernel(%arg0: memref<2x1024xf32, #tpu.memory_space<vmem>>, %arg1: memref<32x1024xbf16, #tpu.memory_space<vmem>>, %arg2: memref<1x32xf32, #tpu.memory_space<vmem>>, %arg3: memref<32x128xbf16, #tpu.memory_space<vmem>>, %arg4: memref<1x128xf32, #tpu.memory_space<vmem>>, %arg5: memref<2x128xf32, #tpu.memory_space<vmem>>) attributes {dimension_semantics = [], scalar_prefetch = 0 : i64, scratch_operands = 0 : i64, tpu.core_type = #tpu.core_type<tc>} {
    %c0 = arith.constant 0 : index
    %c0_0 = arith.constant 0 : index
    %0 = vector.load %arg0[%c0, %c0_0] : memref<2x1024xf32, #tpu.memory_space<vmem>>, vector<2x1024xf32>
    %1 = arith.truncf %0 : vector<2x1024xf32> to vector<2x1024xbf16>
    %c0_1 = arith.constant 0 : index
    %c0_2 = arith.constant 0 : index
    %2 = vector.load %arg1[%c0_1, %c0_2] : memref<32x1024xbf16, #tpu.memory_space<vmem>>, vector<32x1024xbf16>
    %cst = arith.constant dense<0.000000e+00> : vector<2x32xf32>
    %3 = tpu.matmul %1, %2, %cst {dimension_numbers = #tpu.dot_dimension_numbers<[1], [1], [0], [0], [0, 0, 1, 0], [], []>} : vector<2x1024xbf16>, vector<32x1024xbf16>, vector<2x32xf32> -> vector<2x32xf32>
    %c0_3 = arith.constant 0 : index
    %c0_4 = arith.constant 0 : index
    %4 = vector.load %arg2[%c0_3, %c0_4] : memref<1x32xf32, #tpu.memory_space<vmem>>, vector<1x32xf32>
    %5 = vector.broadcast %4 : vector<1x32xf32> to vector<2x32xf32>
    %6 = arith.addf %3, %5 : vector<2x32xf32>
    %cst_5 = arith.constant 0.000000e+00 : f32
    %7 = vector.broadcast %cst_5 : f32 to vector<2x32xf32>
    %8 = arith.maximumf %6, %7 : vector<2x32xf32>
    %9 = arith.truncf %8 : vector<2x32xf32> to vector<2x32xbf16>
    %c0_6 = arith.constant 0 : index
    %c0_7 = arith.constant 0 : index
    %10 = vector.load %arg3[%c0_6, %c0_7] : memref<32x128xbf16, #tpu.memory_space<vmem>>, vector<32x128xbf16>
    %cst_8 = arith.constant dense<0.000000e+00> : vector<2x128xf32>
    %11 = tpu.matmul %9, %10, %cst_8 {dimension_numbers = #tpu.dot_dimension_numbers<[1], [0], [0], [1], [0, 0, 1, 1], [], []>} : vector<2x32xbf16>, vector<32x128xbf16>, vector<2x128xf32> -> vector<2x128xf32>
    %c0_9 = arith.constant 0 : index
    %c0_10 = arith.constant 0 : index
    %12 = vector.load %arg4[%c0_9, %c0_10] : memref<1x128xf32, #tpu.memory_space<vmem>>, vector<1x128xf32>
    %13 = vector.broadcast %12 : vector<1x128xf32> to vector<2x128xf32>
    %14 = arith.addf %11, %13 : vector<2x128xf32>
    %c0_11 = arith.constant 0 : index
    %c0_12 = arith.constant 0 : index
    %15 = vector.load %arg5[%c0_11, %c0_12] : memref<2x128xf32, #tpu.memory_space<vmem>>, vector<2x128xf32>
    tpu.vector_store %arg5[%c0_11, %c0_12], %14 {strides = array<i32>} : memref<2x128xf32, #tpu.memory_space<vmem>>, vector<2x128xf32>,
    return
  }
}

</mosaic_0001>

<llo_original>
// kernel: encoder_forward.1
$region0: #{encoder_forward.1}
  #allocation0 [shape = 'u32[]', space=smem, size = 0x4, offset = 0x4, fixed_abs, tag = 'smem constant byte address 0x4 - core index']
  #allocation1 [shape = 'u32[144,128]{1,0:T(1,128)}', space=vmem, size = 0x12000, scoped, tag = 'internal scratch']
  %s0 = inlined_call_operand.vmem [shape: f32[2,1024], index: 0, kind: input, shape index: {}]
  %s1 = inlined_call_operand.vmem [shape: bf16[32,1024], index: 1, kind: input, shape index: {}]
  %s2 = inlined_call_operand.vmem [shape: f32[1,32], index: 2, kind: input, shape index: {}]
  %s3 = inlined_call_operand.vmem [shape: bf16[32,128], index: 3, kind: input, shape index: {}]
  %s4 = inlined_call_operand.vmem [shape: f32[1,128], index: 4, kind: input, shape index: {}]
  %s5 = inlined_call_operand.vmem [shape: f32[2,128], index: 5, kind: output, shape index: {}]
  %s6 = sld [smem:[#allocation0]]
  $region30: #{encoder_forward.1} parent=0
    _
  %s8 = ssub.s32 1, %s6
  %s9 = scalar_select 0, %s8, %s6
  // Predicated region
  $region2: #{encoder_forward.1} parent=0 // pred_check
    _
  $region3: #{encoder_forward.1} parent=0 // pred_check_branch
    %11 = sbr.rel (0) target = $region5
  $region4: #{encoder_forward.1} parent=0 // pred_region
    _
  $region5: #{encoder_forward.1} parent=0 // pred_fallthru
    _
  // Predicated region
  $region6: #{encoder_forward.1} parent=0 // pred_check
    _
  $region7: #{encoder_forward.1} parent=0 // pred_check_branch
    %13 = sbr.rel (0) target = $region9
  $region8: #{encoder_forward.1} parent=0 // pred_region
    _
  $region9: #{encoder_forward.1} parent=0 // pred_fallthru
    _
  // Predicated region
  $region10: #{encoder_forward.1} parent=0 // pred_check
    _
  $region11: #{encoder_forward.1} parent=0 // pred_check_branch
    %15 = sbr.rel (0) target = $region13
  $region12: #{encoder_forward.1} parent=0 // pred_region
    _
  $region13: #{encoder_forward.1} parent=0 // pred_fallthru
    _
  // Predicated region
  $region14: #{encoder_forward.1} parent=0 // pred_check
    _
  $region15: #{encoder_forward.1} parent=0 // pred_check_branch
    %17 = sbr.rel (0) target = $region17
  $region16: #{encoder_forward.1} parent=0 // pred_region
    _
  $region17: #{encoder_forward.1} parent=0 // pred_fallthru
    _
  // Predicated region
  $region18: #{encoder_forward.1} parent=0 // pred_check
    _
  $region19: #{encoder_forward.1} parent=0 // pred_check_branch
    %19 = sbr.rel (0) target = $region21
  $region20: #{encoder_forward.1} parent=0 // pred_region
    _
  $region21: #{encoder_forward.1} parent=0 // pred_fallthru
    _
  %v21 = vld [vmem:[%s0] sm:$0xff]
  %v22 = vld [vmem:[%s0 + $0x8] sm:$0xff]
  %v25 = vcombine.high %v21, %v21
  %v27 = vunpack.c.l.s4 1983009808
  %v28 = vunpack.c.0.s8 %v27
  %v29 = vlaneseq
  %v30 = vshrl.u32 %v29, 7
  %v31 = vsub.s32 %v28, %v30
  %v32 = vrot.slane %v21, %v31
  %v34 = vunpack.c.l.s4 1983009808
  %v35 = vunpack.c.0.s8 %v34
  %v36 = vlaneseq
  %v37 = vshrl.u32 %v36, 7
  %v38 = vsub.s32 %v35, %v37
  %v39 = vrot.slane %v25, %v38
  %v40 = vcombine.high %v32, %v32
  %v41 = vcombine.high %v39, %v39
  %v42 = vcombine.high %v22, %v22
  %v44 = vunpack.c.l.s4 1983009808
  %v45 = vunpack.c.0.s8 %v44
  %v46 = vlaneseq
  %v47 = vshrl.u32 %v46, 7
  %v48 = vsub.s32 %v45, %v47
  %v49 = vrot.slane %v22, %v48
  %v51 = vunpack.c.l.s4 1983009808
  %v52 = vunpack.c.0.s8 %v51
  %v53 = vlaneseq
  %v54 = vshrl.u32 %v53, 7
  %v55 = vsub.s32 %v52, %v54
  %v56 = vrot.slane %v42, %v55
  %v57 = vcombine.high %v49, %v49
  %v58 = vcombine.high %v56, %v56
  %v67 = vpack.c.bf16 %v32, %v32
  %v68 = vpack.c.bf16 %v40, %v40
  %v69 = vpack.c.bf16 %v39, %v39
  %v70 = vpack.c.bf16 %v41, %v41
  %v71 = vpack.c.bf16 %v49, %v49
  %v72 = vpack.c.bf16 %v57, %v57
  %v73 = vpack.c.bf16 %v56, %v56
  %v74 = vpack.c.bf16 %v58, %v58
  %v75 = vld [vmem:[%s1] sm:$0xff]
  %v76 = vld [vmem:[%s1 + $0x8] sm:$0xff]
  %v77 = vld [vmem:[%s1 + $0x10] sm:$0xff]
  %v78 = vld [vmem:[%s1 + $0x18] sm:$0xff]
  %v79 = vld [vmem:[%s1 + $0x20] sm:$0xff]
  %v80 = vld [vmem:[%s1 + $0x28] sm:$0xff]
  %v81 = vld [vmem:[%s1 + $0x30] sm:$0xff]
  %v82 = vld [vmem:[%s1 + $0x38] sm:$0xff]
  %v83 = vld [vmem:[%s1 + $0x40] sm:$0xff]
  %v84 = vld [vmem:[%s1 + $0x48] sm:$0xff]
  %v85 = vld [vmem:[%s1 + $0x50] sm:$0xff]
  %v86 = vld [vmem:[%s1 + $0x58] sm:$0xff]
  %v87 = vld [vmem:[%s1 + $0x60] sm:$0xff]
  %v88 = vld [vmem:[%s1 + $0x68] sm:$0xff]
  %v89 = vld [vmem:[%s1 + $0x70] sm:$0xff]
  %v90 = vld [vmem:[%s1 + $0x78] sm:$0xff]
  %v91 = vld [vmem:[%s2] sm:$0x1]
  %v93 = vlaneseq
  %v94 = vshrl.u32 %v93, 7
  %v95 = vsub.s32 0, %v94
  %v96 = vrot.slane %v91, %v95
  %v114 = vunpack.c.l.b16 %v75
  %v115 = vunpack.c.h.b16 %v75
  %v116 = vunpack.c.l.b16 %v76
  %v117 = vunpack.c.h.b16 %v76
  %v118 = vunpack.c.l.b16 %v77
  %v119 = vunpack.c.h.b16 %v77
  %v120 = vunpack.c.l.b16 %v78
  %v121 = vunpack.c.h.b16 %v78
  %v122 = vunpack.c.l.b16 %v79
  %v123 = vunpack.c.h.b16 %v79
  %v124 = vunpack.c.l.b16 %v80
  %v125 = vunpack.c.h.b16 %v80
  %v126 = vunpack.c.l.b16 %v81
  %v127 = vunpack.c.h.b16 %v81
  %v128 = vunpack.c.l.b16 %v82
  %v129 = vunpack.c.h.b16 %v82
  %v130 = vunpack.c.l.b16 %v83
  %v131 = vunpack.c.h.b16 %v83
  %v132 = vunpack.c.l.b16 %v84
  %v133 = vunpack.c.h.b16 %v84
  %v134 = vunpack.c.l.b16 %v85
  %v135 = vunpack.c.h.b16 %v85
  %v136 = vunpack.c.l.b16 %v86
  %v137 = vunpack.c.h.b16 %v86
  %v138 = vunpack.c.l.b16 %v87
  %v139 = vunpack.c.h.b16 %v87
  %v140 = vunpack.c.l.b16 %v88
  %v141 = vunpack.c.h.b16 %v88
  %v142 = vunpack.c.l.b16 %v89
  %v143 = vunpack.c.h.b16 %v89
  %v144 = vunpack.c.l.b16 %v90
  %v145 = vunpack.c.h.b16 %v90
  %v146 = vpack.c.b16 %v122, %v114
  %v147 = vpack.c.b16 %v123, %v115
  %v148 = vpack.c.b16 %v124, %v116
  %v149 = vpack.c.b16 %v125, %v117
  %v150 = vpack.c.b16 %v126, %v118
  %v151 = vpack.c.b16 %v127, %v119
  %v152 = vpack.c.b16 %v128, %v120
  %v153 = vpack.c.b16 %v129, %v121
  %v154 = vpack.c.b16 %v138, %v130
  %v155 = vpack.c.b16 %v139, %v131
  %v156 = vpack.c.b16 %v140, %v132
  %v157 = vpack.c.b16 %v141, %v133
  %v158 = vpack.c.b16 %v142, %v134
  %v159 = vpack.c.b16 %v143, %v135
  %v160 = vpack.c.b16 %v144, %v136
  %v161 = vpack.c.b16 %v145, %v137
  %178 = vmatprep.subr.bf16.mxu0 0
  %179 = vmatpush1.bf16.xpose.msra.mxu0 0
  %180 = vmatprep.subr.bf16.mxu0 0
  %181 = vmatpush1.bf16.xpose.msra.mxu0 0
  %182 = vmatprep.subr.bf16.mxu0 0
  %183 = vmatpush1.bf16.xpose.msra.mxu0 0
  %184 = vmatprep.subr.bf16.mxu0 0
  %185 = vmatpush1.bf16.xpose.msra.mxu0 0
  %186 = vmatprep.subr.bf16.mxu0 0
  %187 = vmatpush1.bf16.xpose.msra.mxu0 0
  %188 = vmatprep.subr.bf16.mxu0 0
  %189 = vmatpush1.bf16.xpose.msra.mxu0 0
  %190 = vmatprep.subr.bf16.mxu0 %v155
  %191 = vmatpush1.bf16.xpose.msra.mxu0 %v154
  %192 = vmatprep.subr.bf16.mxu0 %v147
  %193 = vmatpush1.bf16.xpose.msra.mxu0 %v146
  %194 = vmatprep.subr.bf16.mxu0 0
  %195 = vmatpush2.bf16.xpose.msra.mxu0 0
  %196 = vmatprep.subr.bf16.mxu0 0
  %197 = vmatpush2.bf16.xpose.msra.mxu0 0
  %198 = vmatprep.subr.bf16.mxu0 0
  %199 = vmatpush2.bf16.xpose.msra.mxu0 0
  %200 = vmatprep.subr.bf16.mxu0 0
  %201 = vmatpush2.bf16.xpose.msra.mxu0 0
  %202 = vmatprep.subr.bf16.mxu0 0
  %203 = vmatpush2.bf16.xpose.msra.mxu0 0
  %204 = vmatprep.subr.bf16.mxu0 0
  %205 = vmatpush2.bf16.xpose.msra.mxu0 0
  %206 = vmatprep.subr.bf16.mxu0 0
  %207 = vmatpush2.bf16.xpose.msra.mxu0 0
  %208 = vmatprep.subr.bf16.mxu0 0
  %209 = vmatpush2.bf16.xpose.msra.mxu0 0
  %210 = vmatprep.mubr.bf16.mxu0 %v68
  %211 = vmatmul.mubr.bf16.gmra.mxu0 %v67
  %v212 = vpop.f32.mrf.mxu0
  %v213 = vadd.f32 %v96, %v212
  %v214 = vpop.f32.mrf.mxu0
  %v215 = vpop.f32.mrf.mxu0
  %v216 = vpop.f32.mrf.mxu0
  %217 = vdwg.mxu0
  %218 = vmatprep.subr.bf16.mxu0 0
  %219 = vmatpush1.bf16.xpose.msra.mxu0 0
  %220 = vmatprep.subr.bf16.mxu0 0
  %221 = vmatpush1.bf16.xpose.msra.mxu0 0
  %222 = vmatprep.subr.bf16.mxu0 0
  %223 = vmatpush1.bf16.xpose.msra.mxu0 0
  %224 = vmatprep.subr.bf16.mxu0 0
  %225 = vmatpush1.bf16.xpose.msra.mxu0 0
  %226 = vmatprep.subr.bf16.mxu0 0
  %227 = vmatpush1.bf16.xpose.msra.mxu0 0
  %228 = vmatprep.subr.bf16.mxu0 0
  %229 = vmatpush1.bf16.xpose.msra.mxu0 0
  %230 = vmatprep.subr.bf16.mxu0 %v157
  %231 = vmatpush1.bf16.xpose.msra.mxu0 %v156
  %232 = vmatprep.subr.bf16.mxu0 %v149
  %233 = vmatpush1.bf16.xpose.msra.mxu0 %v148
  %234 = vmatprep.subr.bf16.mxu0 0
  %235 = vmatpush2.bf16.xpose.msra.mxu0 0
  %236 = vmatprep.subr.bf16.mxu0 0
  %237 = vmatpush2.bf16.xpose.msra.mxu0 0
  %238 = vmatprep.subr.bf16.mxu0 0
  %239 = vmatpush2.bf16.xpose.msra.mxu0 0
  %240 = vmatprep.subr.bf16.mxu0 0
  %241 = vmatpush2.bf16.xpose.msra.mxu0 0
  %242 = vmatprep.subr.bf16.mxu0 0
  %243 = vmatpush2.bf16.xpose.msra.mxu0 0
  %244 = vmatprep.subr.bf16.mxu0 0
  %245 = vmatpush2.bf16.xpose.msra.mxu0 0
  %246 = vmatprep.subr.bf16.mxu0 0
  %247 = vmatpush2.bf16.xpose.msra.mxu0 0
  %248 = vmatprep.subr.bf16.mxu0 0
  %249 = vmatpush2.bf16.xpose.msra.mxu0 0
  %250 = vmatprep.mubr.bf16.mxu0 %v70
  %251 = vmatmul.mubr.bf16.gmra.mxu0 %v69
  %v252 = vpop.f32.mrf.mxu0
  %v253 = vadd.f32 %v213, %v252
  %v254 = vpop.f32.mrf.mxu0
  %v255 = vpop.f32.mrf.mxu0
  %v256 = vpop.f32.mrf.mxu0
  %257 = vdwg.mxu0
  %258 = vmatprep.subr.bf16.mxu0 0
  %259 = vmatpush1.bf16.xpose.msra.mxu0 0
  %260 = vmatprep.subr.bf16.mxu0 0
  %261 = vmatpush1.bf16.xpose.msra.mxu0 0
  %262 = vmatprep.subr.bf16.mxu0 0
  %263 = vmatpush1.bf16.xpose.msra.mxu0 0
  %264 = vmatprep.subr.bf16.mxu0 0
  %265 = vmatpush1.bf16.xpose.msra.mxu0 0
  %266 = vmatprep.subr.bf16.mxu0 0
  %267 = vmatpush1.bf16.xpose.msra.mxu0 0
  %268 = vmatprep.subr.bf16.mxu0 0
  %269 = vmatpush1.bf16.xpose.msra.mxu0 0
  %270 = vmatprep.subr.bf16.mxu0 %v159
  %271 = vmatpush1.bf16.xpose.msra.mxu0 %v158
  %272 = vmatprep.subr.bf16.mxu0 %v151
  %273 = vmatpush1.bf16.xpose.msra.mxu0 %v150
  %274 = vmatprep.subr.bf16.mxu0 0
  %275 = vmatpush2.bf16.xpose.msra.mxu0 0
  %276 = vmatprep.subr.bf16.mxu0 0
  %277 = vmatpush2.bf16.xpose.msra.mxu0 0
  %278 = vmatprep.subr.bf16.mxu0 0
  %279 = vmatpush2.bf16.xpose.msra.mxu0 0
  %280 = vmatprep.subr.bf16.mxu0 0
  %281 = vmatpush2.bf16.xpose.msra.mxu0 0
  %282 = vmatprep.subr.bf16.mxu0 0
  %283 = vmatpush2.bf16.xpose.msra.mxu0 0
  %284 = vmatprep.subr.bf16.mxu0 0
  %285 = vmatpush2.bf16.xpose.msra.mxu0 0
  %286 = vmatprep.subr.bf16.mxu0 0
  %287 = vmatpush2.bf16.xpose.msra.mxu0 0
  %288 = vmatprep.subr.bf16.mxu0 0
  %289 = vmatpush2.bf16.xpose.msra.mxu0 0
  %290 = vmatprep.mubr.bf16.mxu0 %v72
  %291 = vmatmul.mubr.bf16.gmra.mxu0 %v71
  %v292 = vpop.f32.mrf.mxu0
  %v293 = vadd.f32 %v253, %v292
  %v294 = vpop.f32.mrf.mxu0
  %v295 = vpop.f32.mrf.mxu0
  %v296 = vpop.f32.mrf.mxu0
  %297 = vdwg.mxu0
  %298 = vmatprep.subr.bf16.mxu0 0
  %299 = vmatpush1.bf16.xpose.msra.mxu0 0
  %300 = vmatprep.subr.bf16.mxu0 0
  %301 = vmatpush1.bf16.xpose.msra.mxu0 0
  %302 = vmatprep.subr.bf16.mxu0 0
  %303 = vmatpush1.bf16.xpose.msra.mxu0 0
  %304 = vmatprep.subr.bf16.mxu0 0
  %305 = vmatpush1.bf16.xpose.msra.mxu0 0
  %306 = vmatprep.subr.bf16.mxu0 0
  %307 = vmatpush1.bf16.xpose.msra.mxu0 0
  %308 = vmatprep.subr.bf16.mxu0 0
  %309 = vmatpush1.bf16.xpose.msra.mxu0 0
  %310 = vmatprep.subr.bf16.mxu0 %v161
  %311 = vmatpush1.bf16.xpose.msra.mxu0 %v160
  %312 = vmatprep.subr.bf16.mxu0 %v153
  %313 = vmatpush1.bf16.xpose.msra.mxu0 %v152
  %314 = vmatprep.subr.bf16.mxu0 0
  %315 = vmatpush2.bf16.xpose.msra.mxu0 0
  %316 = vmatprep.subr.bf16.mxu0 0
  %317 = vmatpush2.bf16.xpose.msra.mxu0 0
  %318 = vmatprep.subr.bf16.mxu0 0
  %319 = vmatpush2.bf16.xpose.msra.mxu0 0
  %320 = vmatprep.subr.bf16.mxu0 0
  %321 = vmatpush2.bf16.xpose.msra.mxu0 0
  %322 = vmatprep.subr.bf16.mxu0 0
  %323 = vmatpush2.bf16.xpose.msra.mxu0 0
  %324 = vmatprep.subr.bf16.mxu0 0
  %325 = vmatpush2.bf16.xpose.msra.mxu0 0
  %326 = vmatprep.subr.bf16.mxu0 0
  %327 = vmatpush2.bf16.xpose.msra.mxu0 0
  %328 = vmatprep.subr.bf16.mxu0 0
  %329 = vmatpush2.bf16.xpose.msra.mxu0 0
  %330 = vmatprep.mubr.bf16.mxu0 %v74
  %331 = vmatmul.mubr.bf16.gmra.mxu0 %v73
  %v332 = vpop.f32.mrf.mxu0
  %v333 = vadd.f32 %v293, %v332
  %v334 = vpop.f32.mrf.mxu0
  %v335 = vpop.f32.mrf.mxu0
  %v336 = vpop.f32.mrf.mxu0
  %337 = vdwg.mxu0
  %v338 = vmax.f32 %v333, 0.0
  %v339 = vpack.c.bf16 %v338, %v338
  %v340 = vld [vmem:[%s3] sm:$0xf]
  %v341 = vld [vmem:[%s3 + $0x4] sm:$0xf]
  %v342 = vld [vmem:[%s3 + $0x8] sm:$0xf]
  %v343 = vld [vmem:[%s3 + $0xc] sm:$0xf]
  %v344 = vld [vmem:[%s4] sm:$0x1]
  %v346 = vlaneseq
  %v347 = vshrl.u32 %v346, 7
  %v348 = vsub.s32 0, %v347
  %v349 = vrot.slane %v344, %v348
  %v355 = vunpack.c.l.b16 %v340
  %v356 = vunpack.c.l.b16 %v341
  %v357 = vunpack.c.l.b16 %v342
  %v358 = vunpack.c.l.b16 %v343
  %v359 = vpack.c.b16 %v356, %v355
  %v360 = vpack.c.b16 %v358, %v357
  %vm363 = vcmask 261120
  %v365 = vsel %vm363, %v339, 0
  %367 = vmatprep.subr.bf16.mxu0 0
  %368 = vmatpush1.bf16.msra.mxu0 0
  %369 = vmatprep.subr.bf16.mxu0 0
  %370 = vmatpush1.bf16.msra.mxu0 0
  %371 = vmatprep.subr.bf16.mxu0 0
  %372 = vmatpush1.bf16.msra.mxu0 0
  %373 = vmatprep.subr.bf16.mxu0 0
  %374 = vmatpush1.bf16.msra.mxu0 0
  %375 = vmatprep.subr.bf16.mxu0 0
  %376 = vmatpush1.bf16.msra.mxu0 0
  %377 = vmatprep.subr.bf16.mxu0 0
  %378 = vmatpush1.bf16.msra.mxu0 0
  %379 = vmatprep.subr.bf16.mxu0 0
  %380 = vmatpush1.bf16.msra.mxu0 %v360
  %381 = vmatprep.subr.bf16.mxu0 0
  %382 = vmatpush1.bf16.msra.mxu0 %v359
  %383 = vmatprep.subr.bf16.mxu0 0
  %384 = vmatpush2.bf16.msra.mxu0 0
  %385 = vmatprep.subr.bf16.mxu0 0
  %386 = vmatpush2.bf16.msra.mxu0 0
  %387 = vmatprep.subr.bf16.mxu0 0
  %388 = vmatpush2.bf16.msra.mxu0 0
  %389 = vmatprep.subr.bf16.mxu0 0
  %390 = vmatpush2.bf16.msra.mxu0 0
  %391 = vmatprep.subr.bf16.mxu0 0
  %392 = vmatpush2.bf16.msra.mxu0 0
  %393 = vmatprep.subr.bf16.mxu0 0
  %394 = vmatpush2.bf16.msra.mxu0 0
  %395 = vmatprep.subr.bf16.mxu0 0
  %396 = vmatpush2.bf16.msra.mxu0 0
  %397 = vmatprep.subr.bf16.mxu0 0
  %398 = vmatpush2.bf16.msra.mxu0 0
  %399 = vmatprep.mubr.bf16.mxu0 0
  %400 = vmatmul.mubr.bf16.gmra.mxu0 %v365
  %v401 = vpop.f32.mrf.mxu0
  %v402 = vadd.f32 %v349, %v401
  %v403 = vpop.f32.mrf.mxu0
  %v404 = vpop.f32.mrf.mxu0
  %v405 = vpop.f32.mrf.mxu0
  %406 = vdwg.mxu0
  %407 = vst [vmem:[%s5] sm:$0x3] %v402
  // Predicated region
  $region22: #{encoder_forward.1} parent=0 // pred_check
    _
  $region23: #{encoder_forward.1} parent=0 // pred_check_branch
    %409 = sbr.rel (0) target = $region25
  $region24: #{encoder_forward.1} parent=0 // pred_region
    _
  $region25: #{encoder_forward.1} parent=0 // pred_fallthru
    _
  // Predicated region
  $region26: #{encoder_forward.1} parent=0 // pred_check
    _
  $region27: #{encoder_forward.1} parent=0 // pred_check_branch
    %411 = sbr.rel (0) target = $region29
  $region28: #{encoder_forward.1} parent=0 // pred_region
    _
  $region29: #{encoder_forward.1} parent=0 // pred_fallthru
    _

</llo_original>
